<compile_context>
chip_gen: v7x
topology: tpu7x:2x2x1
jax: 0.10.0
libtpu: 0.0.40
codegen_flags: <defaults>
</compile_context>

<pallas_src>
import jax
import jax.numpy as jnp
from jax.experimental import pallas as pl
from jax.experimental.pallas import tpu as pltpu


def _vmem_capacity_bytes():
    """Physical VMEM per core; conservative 64 MiB (v7x) fallback."""
    try:
        return int(pltpu.get_tpu_info().vmem_capacity_bytes)
    except Exception:
        return 64 * 1024 * 1024


def _pick_tb(n):
    """Batch tile: a multiple of 8 dividing N (lane/sublane-friendly output store),
    capped at N//2 when N >= 16 so the parallel grid axis is >= 2 (v7x megacore).
    Falls back to the full batch (legal since it equals the array dim)."""
    cap = n // 2 if n >= 16 else n
    for tb in (64, 32, 16, 8):
        if tb <= cap and n % tb == 0:
            return tb
    for tb in (64, 32, 16, 8):
        if n % tb == 0:
            return tb
    return n


def _pick_hw_tile(HW, TB, C, itemsize, budget):
    """Spatial tile: full extent if it fits the per-block budget, otherwise a
    multiple of 128 (>= 512 preferred: long DMA rows, few grid steps)."""
    per_col = max(1, TB * C * itemsize)
    if HW * per_col <= budget or HW < 256:
        return HW
    t = (budget // per_col) // 128 * 128
    t = max(512, t) if HW >= 512 else max(128, t)
    return min(t, (HW // 128) * 128)


def _make_kernel(HW_total, hw_tile, TB, lane_partial):
    """Build the kernel with compile-time constants baked in."""
    n_hw = pl.cdiv(HW_total, hw_tile)
    last_hw = n_hw - 1
    needs_mask = (HW_total % hw_tile) != 0
    inv_hw = 1.0 / float(HW_total)
    n_groups = (hw_tile // 128) if lane_partial else 0

    def _accum_lane(xs, xm, sum_acc, max_acc):
        # Pure-VPU lane-group partial reduction into (TB, C, 128) f32 accumulators.
        same = xs is xm
        cs = xs[..., 0:128].astype(jnp.float32)
        cm = cs if same else xm[..., 0:128].astype(jnp.float32)
        s, m = cs, cm
        for g in range(1, n_groups):
            lo = g * 128
            cs = xs[..., lo:lo + 128].astype(jnp.float32)
            s = s + cs
            cm = cs if same else xm[..., lo:lo + 128].astype(jnp.float32)
            m = jnp.maximum(m, cm)
        sum_acc[...] += s
        max_acc[...] = jnp.maximum(max_acc[...], m)

    def _accum_flat(xs, xm, sum_acc, max_acc):
        # Fallback: per-step cross-lane reduce into (TB, C) accumulators.
        sum_acc[...] += jnp.sum(xs, axis=-1, dtype=jnp.float32)
        max_acc[...] = jnp.maximum(
            max_acc[...], jnp.max(xm, axis=-1).astype(jnp.float32))

    accum = _accum_lane if lane_partial else _accum_flat

    def kernel(x_ref, w1t_ref, w2t_ref, o_ref, sum_acc, max_acc):
        # x_ref  : (TB, C, hw_tile)   native-dtype tile of one batch group
        # w1t_ref: (C, C4p)           fc1 weight, pre-transposed, hidden zero-padded
        # w2t_ref: (C4p, C)           fc2 weight, pre-transposed, hidden zero-padded
        # o_ref  : (TB, C)            sigmoid(fc2(relu(fc1(avg))) + fc2(relu(fc1(max))))
        h = pl.program_id(1)

        @pl.when(h == 0)
        def _init():
            sum_acc[...] = jnp.zeros_like(sum_acc)
            max_acc[...] = jnp.full_like(max_acc, -jnp.inf)

        if needs_mask:
            # Interior tiles: fully valid, accumulate with no masking overhead.
            if n_hw > 1:
                @pl.when(h != last_hw)
                def _interior():
                    x = x_ref[...]
                    accum(x, x, sum_acc, max_acc)
        else:
            x = x_ref[...]
            accum(x, x, sum_acc, max_acc)

        @pl.when(h == last_hw)
        def _finalize():
            if needs_mask:
                # Ragged last tile: mask OOB lanes (0 for sum, -inf for max).
                xf = x_ref[...].astype(jnp.float32)
                idx = jax.lax.broadcasted_iota(jnp.int32, xf.shape, 2)
                valid = (last_hw * hw_tile + idx) < HW_total
                x_sum = jnp.where(valid, xf, 0.0)
                x_max = jnp.where(valid, xf, -jnp.inf)
                accum(x_sum, x_max, sum_acc, max_acc)

            if lane_partial:
                # Single cross-lane (XLU) fold per batch tile.
                avg_p = jnp.sum(sum_acc[...], axis=-1) * inv_hw   # (TB, C)
                max_p = jnp.max(max_acc[...], axis=-1)            # (TB, C)
            else:
                avg_p = sum_acc[...] * inv_hw
                max_p = max_acc[...]

            pooled = jnp.concatenate([avg_p, max_p], axis=0)      # (2*TB, C)

            w1t = w1t_ref[...]                                    # keep native dtype
            w2t = w2t_ref[...]
            hid = jnp.dot(pooled.astype(w1t.dtype), w1t,
                          preferred_element_type=jnp.float32)
            hid = jnp.maximum(hid, 0.0)                           # ReLU
            out = jnp.dot(hid.astype(w2t.dtype), w2t,
                          preferred_element_type=jnp.float32)     # (2*TB, C)

            out = out[:TB] + out[TB:]                             # avg branch + max branch
            o_ref[...] = jax.nn.sigmoid(out).astype(o_ref.dtype)

    return kernel


def channel_attention(x, w1, w2, *, hw_tile=None):
    """x: (N, C, H, W) NCHW; w1: (C//4, C); w2: (C, C//4). Returns (N, C, 1, 1)."""
    N, C, H, W = x.shape
    C4 = w1.shape[0]
    HW = H * W
    itemsize = x.dtype.itemsize

    x_flat = x.reshape(N, C, HW)

    # Pre-transpose weights once and zero-pad the hidden dim to a multiple of 128
    # (lane-dense MXU matmuls; zero pad rows/cols contribute nothing).
    C4p = max(128, ((C4 + 127) // 128) * 128)
    w1t = jnp.zeros((C, C4p), w1.dtype).at[:, :C4].set(jnp.transpose(w1))
    w2t = jnp.zeros((C4p, C), w2.dtype).at[:C4, :].set(jnp.transpose(w2))

    cap = _vmem_capacity_bytes()

    TB = _pick_tb(N)
    # Shrink the batch tile (keeping it a multiple of 8 dividing N) until two
    # 512-wide x blocks + lane-partial accumulators fit in ~half of VMEM.
    while TB % 16 == 0 and (2 * TB * C * itemsize * min(HW, 512)
                            + 2 * TB * C * 128 * 4) > cap // 2:
        TB //= 2

    if hw_tile is None:
        hw_tile = _pick_hw_tile(HW, TB, C, itemsize, budget=min(8 << 20, cap // 8))
    else:
        hw_tile = min(int(hw_tile), HW)
        if hw_tile < HW:
            hw_tile = max(128, (hw_tile // 128) * 128)

    # Lane-resident accumulators need hw_tile % 128 == 0 and a bounded footprint.
    lane_partial = (hw_tile % 128 == 0) and (2 * TB * C * 128 * 4 <= cap // 4)

    n_hw = pl.cdiv(HW, hw_tile)
    grid = (N // TB, n_hw)
    kernel = _make_kernel(HW, hw_tile, TB, lane_partial)

    acc_shape = (TB, C, 128) if lane_partial else (TB, C)

    # Explicit VMEM limit: 2x double-buffered x block + weights + output + accumulators.
    x_block_bytes = TB * C * hw_tile * itemsize
    w_bytes = (C * C4p + C4p * C) * w1.dtype.itemsize
    out_block_bytes = TB * C * itemsize
    acc_bytes = 2 * TB * C * (128 if lane_partial else 1) * 4
    need = 2 * x_block_bytes + 2 * w_bytes + 2 * out_block_bytes + acc_bytes + (2 << 20)
    vmem_limit = int(min(max(need, 32 * 1024 * 1024), cap))

    out = pl.pallas_call(
        kernel,
        out_shape=jax.ShapeDtypeStruct((N, C), x.dtype),
        grid_spec=pltpu.PrefetchScalarGridSpec(
            num_scalar_prefetch=0,
            grid=grid,
            in_specs=[
                pl.BlockSpec((TB, C, hw_tile), lambda n, h: (n, 0, h)),
                pl.BlockSpec((C, C4p), lambda n, h: (0, 0)),
                pl.BlockSpec((C4p, C), lambda n, h: (0, 0)),
            ],
            out_specs=pl.BlockSpec((TB, C), lambda n, h: (n, 0)),
            scratch_shapes=[
                pltpu.VMEM(acc_shape, jnp.float32),   # running sum (lane partials)
                pltpu.VMEM(acc_shape, jnp.float32),   # running max (lane partials)
            ],
        ),
        compiler_params=pltpu.CompilerParams(
            dimension_semantics=("parallel", "arbitrary"),
            vmem_limit_bytes=vmem_limit),
    )(x_flat, w1t, w2t)

    return out.reshape(N, C, 1, 1)


def channel_attention_ref(x, w1, w2):
    """Pure-JAX reference mirroring the PyTorch forward (HIGHEST-precision matmuls)."""
    avg_p = jnp.mean(x, axis=(2, 3))   # AdaptiveAvgPool2d(1)
    max_p = jnp.max(x, axis=(2, 3))    # AdaptiveMaxPool2d(1)

    def mlp(p):
        h = jnp.maximum(
            jnp.dot(p, w1.T, precision=jax.lax.Precision.HIGHEST), 0.0)
        return jnp.dot(h, w2.T, precision=jax.lax.Precision.HIGHEST)

    out = mlp(avg_p) + mlp(max_p)
    return jax.nn.sigmoid(out)[:, :, None, None]


if __name__ == "__main__":
    key = jax.random.PRNGKey(0)
    k_x, k_w1, k_w2, k_x2 = jax.random.split(key, 4)

    # Small shapes consistent with the module (in_planes=16 -> hidden = 16 // 4 = 4).
    N, C, H, W = 2, 16, 16, 16
    C4 = C // 4
    x = jax.random.normal(k_x, (N, C, H, W), dtype=jnp.float32)
    w1 = jax.random.uniform(k_w1, (C4, C), jnp.float32, -1.0, 1.0) * (1.0 / jnp.sqrt(C))
    w2 = jax.random.uniform(k_w2, (C, C4), jnp.float32, -1.0, 1.0) * (1.0 / jnp.sqrt(C4))

    # Tolerance is driven by TPU matmul precision inside the kernel (default passes)
    # vs the HIGHEST-precision reference; real bugs produce errors >> 1e-3.
    TOL = dict(atol=1e-3, rtol=1e-3)

    # 1) Default tiling: single 256-wide block, unmasked lane-partial path.
    ref = channel_attention_ref(x, w1, w2)
    out = jax.block_until_ready(channel_attention(x, w1, w2))
    assert out.shape == (N, C, 1, 1)
    assert jnp.allclose(out, ref, **TOL), "mismatch vs reference (default tiling)"

    # 2) Forced HW tiling with a ragged last tile (HW=400 in 256-wide tiles):
    #    exercises the accumulator + last-step-masked lane-partial path.
    N2, C2, H2, W2 = 2, 16, 20, 20
    x2 = jax.random.normal(k_x2, (N2, C2, H2, W2), dtype=jnp.float32)
    ref2 = channel_attention_ref(x2, w1, w2)
    out2 = jax.block_until_ready(channel_attention(x2, w1, w2, hw_tile=256))
    assert jnp.allclose(out2, ref2, **TOL), "mismatch vs reference (tiled ragged HW)"

    # 3) Default planner on the odd HW (single full 400-wide block):
    #    exercises the cross-lane fallback path (hw_tile not a multiple of 128).
    out3 = jax.block_until_ready(channel_attention(x2, w1, w2))
    assert jnp.allclose(out3, ref2, **TOL), "mismatch vs reference (full-HW fallback)"

    print("KERNEL_OK")
</pallas_src>

<mosaic_0001>
module attributes {stable_mosaic.version = 11 : i64} {
  func.func @kernel(%arg0: i32, %arg1: i32, %arg2: memref<2x16x256xf32, #tpu.memory_space<vmem>>, %arg3: memref<16x128xf32, #tpu.memory_space<vmem>>, %arg4: memref<128x16xf32, #tpu.memory_space<vmem>>, %arg5: memref<2x16xf32, #tpu.memory_space<vmem>>, %arg6: memref<2x16x128xf32, #tpu.memory_space<vmem>>, %arg7: memref<2x16x128xf32, #tpu.memory_space<vmem>>) attributes {dimension_semantics = [#tpu.dimension_semantics<parallel>, #tpu.dimension_semantics<arbitrary>], iteration_bounds = array<i64: 1, 1>, scalar_prefetch = 0 : i64, scratch_operands = 2 : i64, tpu.core_type = #tpu.core_type<tc>, window_params = [{transform_indices = @transform_0, window_bounds = array<i64: 2, 16, 256>}, {pipeline_mode = #tpu.pipeline_mode<synchronous>, transform_indices = @transform_1, window_bounds = array<i64: 16, 128>}, {pipeline_mode = #tpu.pipeline_mode<synchronous>, transform_indices = @transform_2, window_bounds = array<i64: 128, 16>}, {transform_indices = @transform_3, window_bounds = array<i64: 2, 16>}]} {
    %c0_i32 = arith.constant 0 : i32
    %0 = arith.cmpi eq, %arg1, %c0_i32 : i32
    %1 = arith.extui %0 : i1 to i32
    %c0_i32_0 = arith.constant 0 : i32
    %2 = arith.cmpi ne, %1, %c0_i32_0 : i32
    scf.if %2 {
      %cst = arith.constant 0.000000e+00 : f32
      %17 = vector.broadcast %cst : f32 to vector<2x16x128xf32>
      %c0_17 = arith.constant 0 : index
      %c0_18 = arith.constant 0 : index
      %c0_19 = arith.constant 0 : index
      %18 = vector.load %arg6[%c0_17, %c0_18, %c0_19] : memref<2x16x128xf32, #tpu.memory_space<vmem>>, vector<2x16x128xf32>
      tpu.vector_store %arg6[%c0_17, %c0_18, %c0_19], %17 {strides = array<i32>} : memref<2x16x128xf32, #tpu.memory_space<vmem>>, vector<2x16x128xf32>,
      %cst_20 = arith.constant 0xFF800000 : f32
      %19 = vector.broadcast %cst_20 : f32 to vector<2x16x128xf32>
      %c0_21 = arith.constant 0 : index
      %c0_22 = arith.constant 0 : index
      %c0_23 = arith.constant 0 : index
      %20 = vector.load %arg7[%c0_21, %c0_22, %c0_23] : memref<2x16x128xf32, #tpu.memory_space<vmem>>, vector<2x16x128xf32>
      tpu.vector_store %arg7[%c0_21, %c0_22, %c0_23], %19 {strides = array<i32>} : memref<2x16x128xf32, #tpu.memory_space<vmem>>, vector<2x16x128xf32>,
    } else {
    }
    %c0 = arith.constant 0 : index
    %c0_1 = arith.constant 0 : index
    %c0_2 = arith.constant 0 : index
    %3 = vector.load %arg2[%c0, %c0_1, %c0_2] : memref<2x16x256xf32, #tpu.memory_space<vmem>>, vector<2x16x256xf32>
    %4 = vector.extract_strided_slice %3 {offsets = [0, 0, 0], sizes = [2, 16, 128], strides = [1, 1, 1]} : vector<2x16x256xf32> to vector<2x16x128xf32>
    %5 = vector.extract_strided_slice %3 {offsets = [0, 0, 128], sizes = [2, 16, 128], strides = [1, 1, 1]} : vector<2x16x256xf32> to vector<2x16x128xf32>
    %6 = arith.addf %4, %5 : vector<2x16x128xf32>
    %7 = arith.maximumf %4, %5 : vector<2x16x128xf32>
    %c0_3 = arith.constant 0 : index
    %c0_4 = arith.constant 0 : index
    %c0_5 = arith.constant 0 : index
    %8 = vector.load %arg6[%c0_3, %c0_4, %c0_5] : memref<2x16x128xf32, #tpu.memory_space<vmem>>, vector<2x16x128xf32>
    %9 = arith.addf %8, %6 : vector<2x16x128xf32>
    %c0_6 = arith.constant 0 : index
    %c0_7 = arith.constant 0 : index
    %c0_8 = arith.constant 0 : index
    %10 = vector.load %arg6[%c0_6, %c0_7, %c0_8] : memref<2x16x128xf32, #tpu.memory_space<vmem>>, vector<2x16x128xf32>
    tpu.vector_store %arg6[%c0_6, %c0_7, %c0_8], %9 {strides = array<i32>} : memref<2x16x128xf32, #tpu.memory_space<vmem>>, vector<2x16x128xf32>,
    %c0_9 = arith.constant 0 : index
    %c0_10 = arith.constant 0 : index
    %c0_11 = arith.constant 0 : index
    %11 = vector.load %arg7[%c0_9, %c0_10, %c0_11] : memref<2x16x128xf32, #tpu.memory_space<vmem>>, vector<2x16x128xf32>
    %12 = arith.maximumf %11, %7 : vector<2x16x128xf32>
    %c0_12 = arith.constant 0 : index
    %c0_13 = arith.constant 0 : index
    %c0_14 = arith.constant 0 : index
    %13 = vector.load %arg7[%c0_12, %c0_13, %c0_14] : memref<2x16x128xf32, #tpu.memory_space<vmem>>, vector<2x16x128xf32>
    tpu.vector_store %arg7[%c0_12, %c0_13, %c0_14], %12 {strides = array<i32>} : memref<2x16x128xf32, #tpu.memory_space<vmem>>, vector<2x16x128xf32>,
    %c0_i32_15 = arith.constant 0 : i32
    %14 = arith.cmpi eq, %arg1, %c0_i32_15 : i32
    %15 = arith.extui %14 : i1 to i32
    %c0_i32_16 = arith.constant 0 : i32
    %16 = arith.cmpi ne, %15, %c0_i32_16 : i32
    scf.if %16 {
      %c0_17 = arith.constant 0 : index
      %c0_18 = arith.constant 0 : index
      %c0_19 = arith.constant 0 : index
      %17 = vector.load %arg6[%c0_17, %c0_18, %c0_19] : memref<2x16x128xf32, #tpu.memory_space<vmem>>, vector<2x16x128xf32>
      %cst = arith.constant dense<0.000000e+00> : vector<2x16xf32>
      %18 = vector.multi_reduction <add>, %17, %cst [2] : vector<2x16x128xf32> to vector<2x16xf32>
      %cst_20 = arith.constant 3.906250e-03 : f32
      %19 = vector.broadcast %cst_20 : f32 to vector<2x16xf32>
      %20 = arith.mulf %18, %19 : vector<2x16xf32>
      %c0_21 = arith.constant 0 : index
      %c0_22 = arith.constant 0 : index
      %c0_23 = arith.constant 0 : index
      %21 = vector.load %arg7[%c0_21, %c0_22, %c0_23] : memref<2x16x128xf32, #tpu.memory_space<vmem>>, vector<2x16x128xf32>
      %cst_24 = arith.constant dense<0xFF800000> : vector<2x16xf32>
      %22 = vector.multi_reduction <maximumf>, %21, %cst_24 [2] : vector<2x16x128xf32> to vector<2x16xf32>
      %23 = tpu.concatenate %20, %22 in 0 : vector<2x16xf32>, vector<2x16xf32> -> vector<4x16xf32>
      %c0_25 = arith.constant 0 : index
      %c0_26 = arith.constant 0 : index
      %24 = vector.load %arg3[%c0_25, %c0_26] : memref<16x128xf32, #tpu.memory_space<vmem>>, vector<16x128xf32>
      %c0_27 = arith.constant 0 : index
      %c0_28 = arith.constant 0 : index
      %25 = vector.load %arg4[%c0_27, %c0_28] : memref<128x16xf32, #tpu.memory_space<vmem>>, vector<128x16xf32>
      %cst_29 = arith.constant dense<0.000000e+00> : vector<4x128xf32>
      %26 = tpu.matmul %23, %24, %cst_29 {dimension_numbers = #tpu.dot_dimension_numbers<[1], [0], [0], [1], [0, 0, 1, 1], [], []>} : vector<4x16xf32>, vector<16x128xf32>, vector<4x128xf32> -> vector<4x128xf32>
      %cst_30 = arith.constant 0.000000e+00 : f32
      %27 = vector.broadcast %cst_30 : f32 to vector<4x128xf32>
      %28 = arith.maximumf %26, %27 : vector<4x128xf32>
      %cst_31 = arith.constant dense<0.000000e+00> : vector<4x16xf32>
      %29 = tpu.matmul %28, %25, %cst_31 {dimension_numbers = #tpu.dot_dimension_numbers<[1], [0], [0], [1], [0, 0, 1, 1], [], []>} : vector<4x128xf32>, vector<128x16xf32>, vector<4x16xf32> -> vector<4x16xf32>
      %30 = vector.extract_strided_slice %29 {offsets = [0, 0], sizes = [2, 16], strides = [1, 1]} : vector<4x16xf32> to vector<2x16xf32>
      %31 = vector.extract_strided_slice %29 {offsets = [2, 0], sizes = [2, 16], strides = [1, 1]} : vector<4x16xf32> to vector<2x16xf32>
      %32 = arith.addf %30, %31 : vector<2x16xf32>
      %33 = arith.negf %32 : vector<2x16xf32>
      %34 = math.exp %33 : vector<2x16xf32>
      %cst_32 = arith.constant 1.000000e+00 : f32
      %35 = vector.broadcast %cst_32 : f32 to vector<2x16xf32>
      %36 = arith.addf %35, %34 : vector<2x16xf32>
      %37 = arith.divf %35, %36 : vector<2x16xf32>
      %c0_33 = arith.constant 0 : index
      %c0_34 = arith.constant 0 : index
      %38 = vector.load %arg5[%c0_33, %c0_34] : memref<2x16xf32, #tpu.memory_space<vmem>>, vector<2x16xf32>
      tpu.vector_store %arg5[%c0_33, %c0_34], %37 {strides = array<i32>} : memref<2x16xf32, #tpu.memory_space<vmem>>, vector<2x16xf32>,
    } else {
    }
    return
  }
  func.func @transform_0(%arg0: i32, %arg1: i32) -> (i32, i32, i32) {
    %c0_i32 = arith.constant 0 : i32
    %c0_i32_0 = arith.constant 0 : i32
    return %arg0, %c0_i32, %arg1 : i32, i32, i32
  }
  func.func @transform_1(%arg0: i32, %arg1: i32) -> (i32, i32) {
    %c0_i32 = arith.constant 0 : i32
    %c0_i32_0 = arith.constant 0 : i32
    %c0_i32_1 = arith.constant 0 : i32
    return %c0_i32, %c0_i32_0 : i32, i32
  }
  func.func @transform_2(%arg0: i32, %arg1: i32) -> (i32, i32) {
    %c0_i32 = arith.constant 0 : i32
    %c0_i32_0 = arith.constant 0 : i32
    %c0_i32_1 = arith.constant 0 : i32
    return %c0_i32, %c0_i32_0 : i32, i32
  }
  func.func @transform_3(%arg0: i32, %arg1: i32) -> (i32, i32) {
    %c0_i32 = arith.constant 0 : i32
    %c0_i32_0 = arith.constant 0 : i32
    return %arg0, %c0_i32 : i32, i32
  }
}

</mosaic_0001>

<llo_original>
// kernel: tpu_custom_call.1
$region0: #{tpu_custom_call.1}
  #allocation0 [shape = 'u32[]', space=smem, size = 0x4, offset = 0x4, fixed_abs, tag = 'smem constant byte address 0x4 - core index']
  #allocation1 [shape = 'u32[144,128]{1,0:T(1,128)}', space=vmem, size = 0x12000, scoped, tag = 'internal scratch']
  #allocation2 [shape = 'f32[2,16,128]{2,1,0:T(8,128)}', space=vmem, size = 0x4000, scoped, tag = 'scratch operand']
  #allocation3 [shape = 'f32[2,16,128]{2,1,0:T(8,128)}', space=vmem, size = 0x4000, scoped, tag = 'scratch operand']
  %s0 = inlined_call_operand.vmem [shape: f32[2,16,256], index: 0, kind: input, shape index: {}]
  %s1 = inlined_call_operand.vmem [shape: f32[16,128], index: 1, kind: input, shape index: {}]
  %s2 = inlined_call_operand.vmem [shape: f32[128,16], index: 2, kind: input, shape index: {}]
  %s3 = inlined_call_operand.hbm [shape: f32[2,16], index: 3, kind: output, shape index: {}]
  %s4 = sld [smem:[#allocation0]]
  $region30: #{tpu_custom_call.1} parent=0
    _
  %s6 = ssub.s32 1, %s4
  %s7 = scalar_select 0, %s6, %s4
  $region1: #{tpu_custom_call.1} parent=0
    #allocation4 [shape = 'u8[1024]{0}', space=vmem, size = 0x400, scoped, tag = 'output window, operand 0, single buffered']
    #allocation5 [shape = 's32[1]{0}', space=sflag, size = 0x4, scoped, tag = 'scoped memory for tpu_custom_call.1']
    %8 = vsyncpa [#allocation5], 0
    // Predicated region
    $region2: #{tpu_custom_call.1} parent=1 // pred_check
      _
    $region3: #{tpu_custom_call.1} parent=1 // pred_check_branch
      %10 = sbr.rel (0) target = $region5
    $region4: #{tpu_custom_call.1} parent=1 // pred_region
      _
    $region5: #{tpu_custom_call.1} parent=1 // pred_fallthru
      _
    // Predicated region
    $region6: #{tpu_custom_call.1} parent=1 // pred_check
      _
    $region7: #{tpu_custom_call.1} parent=1 // pred_check_branch
      %12 = sbr.rel (0) target = $region9
    $region8: #{tpu_custom_call.1} parent=1 // pred_region
      _
    $region9: #{tpu_custom_call.1} parent=1 // pred_fallthru
      _
    // Predicated region
    $region10: #{tpu_custom_call.1} parent=1 // pred_check
      _
    $region11: #{tpu_custom_call.1} parent=1 // pred_check_branch
      %14 = sbr.rel (0) target = $region13
    $region12: #{tpu_custom_call.1} parent=1 // pred_region
      _
    $region13: #{tpu_custom_call.1} parent=1 // pred_fallthru
      _
    %p15 = scmp.eq.s32.totalorder 0, 0
    // Predicated region
    $region14: #{tpu_custom_call.1} parent=1 // pred_check
      %p16 = pneg %p15
    $region15: #{tpu_custom_call.1} parent=1 // pred_check_branch
      %18 = sbr.rel (%p16) target = $region17
    $region16: #{tpu_custom_call.1} parent=1 // pred_region
      %19 = vst [vmem:[#allocation2] sm:$0xff] 0.0
      %20 = vst [vmem:[#allocation2 + $0x8] sm:$0xff] 0.0
      %21 = vst [vmem:[#allocation2 + $0x10] sm:$0xff] 0.0
      %22 = vst [vmem:[#allocation2 + $0x18] sm:$0xff] 0.0
      %23 = vst [vmem:[#allocation3] sm:$0xff] -inf
      %24 = vst [vmem:[#allocation3 + $0x8] sm:$0xff] -inf
      %25 = vst [vmem:[#allocation3 + $0x10] sm:$0xff] -inf
      %26 = vst [vmem:[#allocation3 + $0x18] sm:$0xff] -inf
    $region17: #{tpu_custom_call.1} parent=1 // pred_fallthru
      _
    %v27 = vld [vmem:[%s0] sm:$0xff]
    %v28 = vld [vmem:[%s0 + $0x8] sm:$0xff]
    %v29 = vld [vmem:[%s0 + $0x10] sm:$0xff]
    %v30 = vld [vmem:[%s0 + $0x18] sm:$0xff]
    %v31 = vld [vmem:[%s0 + $0x20] sm:$0xff]
    %v32 = vld [vmem:[%s0 + $0x28] sm:$0xff]
    %v33 = vld [vmem:[%s0 + $0x30] sm:$0xff]
    %v34 = vld [vmem:[%s0 + $0x38] sm:$0xff]
    %v35 = vadd.f32 %v27, %v28
    %v36 = vadd.f32 %v29, %v30
    %v37 = vadd.f32 %v31, %v32
    %v38 = vadd.f32 %v33, %v34
    %v39 = vmax.f32 %v27, %v28
    %v40 = vmax.f32 %v29, %v30
    %v41 = vmax.f32 %v31, %v32
    %v42 = vmax.f32 %v33, %v34
    %v43 = vld [vmem:[#allocation2] sm:$0xff]
    %v44 = vld [vmem:[#allocation2 + $0x8] sm:$0xff]
    %v45 = vld [vmem:[#allocation2 + $0x10] sm:$0xff]
    %v46 = vld [vmem:[#allocation2 + $0x18] sm:$0xff]
    %v47 = vadd.f32 %v43, %v35
    %v48 = vadd.f32 %v44, %v36
    %v49 = vadd.f32 %v45, %v37
    %v50 = vadd.f32 %v46, %v38
    %51 = vst [vmem:[#allocation2] sm:$0xff] %v47
    %52 = vst [vmem:[#allocation2 + $0x8] sm:$0xff] %v48
    %53 = vst [vmem:[#allocation2 + $0x10] sm:$0xff] %v49
    %54 = vst [vmem:[#allocation2 + $0x18] sm:$0xff] %v50
    %v55 = vld [vmem:[#allocation3] sm:$0xff]
    %v56 = vld [vmem:[#allocation3 + $0x8] sm:$0xff]
    %v57 = vld [vmem:[#allocation3 + $0x10] sm:$0xff]
    %v58 = vld [vmem:[#allocation3 + $0x18] sm:$0xff]
    %v59 = vmax.f32 %v55, %v39
    %v60 = vmax.f32 %v56, %v40
    %v61 = vmax.f32 %v57, %v41
    %v62 = vmax.f32 %v58, %v42
    %63 = vst [vmem:[#allocation3] sm:$0xff] %v59
    %64 = vst [vmem:[#allocation3 + $0x8] sm:$0xff] %v60
    %65 = vst [vmem:[#allocation3 + $0x10] sm:$0xff] %v61
    %66 = vst [vmem:[#allocation3 + $0x18] sm:$0xff] %v62
    // Predicated region
    $region18: #{tpu_custom_call.1} parent=1 // pred_check
      %p67 = pneg %p15
    $region19: #{tpu_custom_call.1} parent=1 // pred_check_branch
      %69 = sbr.rel (%p67) target = $region21
    $region20: #{tpu_custom_call.1} parent=1 // pred_region
      %v70 = vld [vmem:[#allocation2] sm:$0xff]
      %v71 = vld [vmem:[#allocation2 + $0x8] sm:$0xff]
      %v72 = vld [vmem:[#allocation2 + $0x10] sm:$0xff]
      %v73 = vld [vmem:[#allocation2 + $0x18] sm:$0xff]
      %74 = vadd.xlane.f32.xlu0 %v70
      %v75 = vpop.xlane.xlu0 %74
      %76 = vadd.xlane.f32.xlu0 %v71
      %v77 = vpop.xlane.xlu0 %76
      %78 = vadd.xlane.f32.xlu0 %v72
      %v79 = vpop.xlane.xlu0 %78
      %80 = vadd.xlane.f32.xlu0 %v73
      %v81 = vpop.xlane.xlu0 %80
      %v82 = vmul.f32 %v75, 0.00390625
      %v83 = vmul.f32 %v77, 0.00390625
      %v84 = vmul.f32 %v79, 0.00390625
      %v85 = vmul.f32 %v81, 0.00390625
      %v86 = vld [vmem:[#allocation3] sm:$0xff]
      %v87 = vld [vmem:[#allocation3 + $0x8] sm:$0xff]
      %v88 = vld [vmem:[#allocation3 + $0x10] sm:$0xff]
      %v89 = vld [vmem:[#allocation3 + $0x18] sm:$0xff]
      %90 = vmax.xlane.f32.xlu0 %v86
      %v91 = vpop.xlane.xlu0 %90
      %92 = vmax.xlane.f32.xlu0 %v87
      %v93 = vpop.xlane.xlu0 %92
      %94 = vmax.xlane.f32.xlu0 %v88
      %v95 = vpop.xlane.xlu0 %94
      %96 = vmax.xlane.f32.xlu0 %v89
      %v97 = vpop.xlane.xlu0 %96
      %v102 = vlaneseq
      %v103 = vand.u32 %v102, 127
      %v104 = vlaneseq
      %v105 = vshrl.u32 %v104, 7
      %v106 = vsub.s32 %v103, %v105
      %v107 = vrot.slane %v82, %v106
      %v108 = vadd.s32 %v103, 4294967288
      %v109 = vlaneseq
      %v110 = vshrl.u32 %v109, 7
      %v111 = vsub.s32 %v108, %v110
      %v112 = vrot.slane %v83, %v111
      %vm113 = vcmask 130112
      %v114 = vsel %vm113, %v112, %v107
      %v115 = vlaneseq
      %v116 = vshrl.u32 %v115, 7
      %v117 = vsub.s32 %v103, %v116
      %v118 = vrot.slane %v84, %v117
      %v119 = vlaneseq
      %v120 = vshrl.u32 %v119, 7
      %v121 = vsub.s32 %v108, %v120
      %v122 = vrot.slane %v85, %v121
      %v123 = vsel %vm113, %v122, %v118
      %vm124 = vcmask 1041409
      %v125 = vsel %vm124, %v123, %v114
      %v131 = vlaneseq
      %v132 = vshrl.u32 %v131, 7
      %v133 = vsub.s32 %v103, %v132
      %v134 = vrot.slane %v91, %v133
      %v135 = vlaneseq
      %v136 = vshrl.u32 %v135, 7
      %v137 = vsub.s32 %v108, %v136
      %v138 = vrot.slane %v93, %v137
      %v139 = vsel %vm113, %v138, %v134
      %v140 = vlaneseq
      %v141 = vshrl.u32 %v140, 7
      %v142 = vsub.s32 %v103, %v141
      %v143 = vrot.slane %v95, %v142
      %v144 = vlaneseq
      %v145 = vshrl.u32 %v144, 7
      %v146 = vsub.s32 %v108, %v145
      %v147 = vrot.slane %v97, %v146
      %v148 = vsel %vm113, %v147, %v143
      %vm149 = vcmask 1043459
      %v150 = vsel %vm149, %v148, %v139
      %vm152 = vcmask 1041408
      %v153 = vsel %vm152, %v125, %v150
      %v154 = vld [vmem:[%s1] sm:$0xff]
      %v155 = vld [vmem:[%s1 + $0x8] sm:$0xff]
      %v156 = vld [vmem:[%s2] sm:$0xff]
      %v157 = vld [vmem:[%s2 + $0x8] sm:$0xff]
      %v158 = vld [vmem:[%s2 + $0x10] sm:$0xff]
      %v159 = vld [vmem:[%s2 + $0x18] sm:$0xff]
      %v160 = vld [vmem:[%s2 + $0x20] sm:$0xff]
      %v161 = vld [vmem:[%s2 + $0x28] sm:$0xff]
      %v162 = vld [vmem:[%s2 + $0x30] sm:$0xff]
      %v163 = vld [vmem:[%s2 + $0x38] sm:$0xff]
      %v164 = vld [vmem:[%s2 + $0x40] sm:$0xff]
      %v165 = vld [vmem:[%s2 + $0x48] sm:$0xff]
      %v166 = vld [vmem:[%s2 + $0x50] sm:$0xff]
      %v167 = vld [vmem:[%s2 + $0x58] sm:$0xff]
      %v168 = vld [vmem:[%s2 + $0x60] sm:$0xff]
      %v169 = vld [vmem:[%s2 + $0x68] sm:$0xff]
      %v170 = vld [vmem:[%s2 + $0x70] sm:$0xff]
      %v171 = vld [vmem:[%s2 + $0x78] sm:$0xff]
      %vm172 = vcmask 130048
      %v174 = vsel %vm172, %v153, 0
      %176 = vmatprep.subr.mxu0 0.0
      %177 = vmatpush1.msra.mxu0 %v154
      %178 = vmatprep.subr.mxu0 0.0
      %179 = vmatpush1.msra.mxu0 %v155
      %180 = vmatprep.subr.mxu0 0.0
      %181 = vmatpush1.msra.mxu0 0.0
      %182 = vmatprep.subr.mxu0 0.0
      %183 = vmatpush1.msra.mxu0 0.0
      %184 = vmatprep.subr.mxu0 0.0
      %185 = vmatpush1.msra.mxu0 0.0
      %186 = vmatprep.subr.mxu0 0.0
      %187 = vmatpush1.msra.mxu0 0.0
      %188 = vmatprep.subr.mxu0 0.0
      %189 = vmatpush1.msra.mxu0 0.0
      %190 = vmatprep.subr.mxu0 0.0
      %191 = vmatpush1.msra.mxu0 0.0
      %192 = vmatprep.subr.mxu0 0.0
      %193 = vmatpush1.msra.mxu0 0.0
      %194 = vmatprep.subr.mxu0 0.0
      %195 = vmatpush1.msra.mxu0 0.0
      %196 = vmatprep.subr.mxu0 0.0
      %197 = vmatpush1.msra.mxu0 0.0
      %198 = vmatprep.subr.mxu0 0.0
      %199 = vmatpush1.msra.mxu0 0.0
      %200 = vmatprep.subr.mxu0 0.0
      %201 = vmatpush1.msra.mxu0 0.0
      %202 = vmatprep.subr.mxu0 0.0
      %203 = vmatpush1.msra.mxu0 0.0
      %204 = vmatprep.subr.mxu0 0.0
      %205 = vmatpush1.msra.mxu0 0.0
      %206 = vmatprep.subr.mxu0 0.0
      %207 = vmatpush1.msra.mxu0 0.0
      %208 = vmatprep.subr.mxu0 0.0
      %209 = vmatpush1.msra.mxu0 0.0
      %210 = vmatprep.subr.mxu0 0.0
      %211 = vmatpush1.msra.mxu0 0.0
      %212 = vmatprep.subr.mxu0 0.0
      %213 = vmatpush1.msra.mxu0 0.0
      %214 = vmatprep.subr.mxu0 0.0
      %215 = vmatpush1.msra.mxu0 0.0
      %216 = vmatprep.subr.mxu0 0.0
      %217 = vmatpush1.msra.mxu0 0.0
      %218 = vmatprep.subr.mxu0 0.0
      %219 = vmatpush1.msra.mxu0 0.0
      %220 = vmatprep.subr.mxu0 0.0
      %221 = vmatpush1.msra.mxu0 0.0
      %222 = vmatprep.subr.mxu0 0.0
      %223 = vmatpush1.msra.mxu0 0.0
      %224 = vmatprep.subr.mxu0 0.0
      %225 = vmatpush1.msra.mxu0 0.0
      %226 = vmatprep.subr.mxu0 0.0
      %227 = vmatpush1.msra.mxu0 0.0
      %228 = vmatprep.subr.mxu0 0.0
      %229 = vmatpush1.msra.mxu0 0.0
      %230 = vmatprep.subr.mxu0 0.0
      %231 = vmatpush1.msra.mxu0 0.0
      %232 = vmatprep.subr.mxu0 0.0
      %233 = vmatpush1.msra.mxu0 0.0
      %234 = vmatprep.subr.mxu0 0.0
      %235 = vmatpush1.msra.mxu0 0.0
      %236 = vmatprep.subr.mxu0 0.0
      %237 = vmatpush1.msra.mxu0 0.0
      %238 = vmatprep.subr.mxu0 0.0
      %239 = vmatpush1.msra.mxu0 0.0
      %240 = vmatprep.mubr.f32.mxu0 0.0
      %241 = vmatmul.mubr.f32.gmra.mrb[0].mxu0 %v174
      %v242 = vpop.f32.mrb[0].mxu0
      %v243 = vadd.f32 0.0, %v242
      %v244 = vpop.f32.mrb[0].mxu0
      %245 = vdwg.mxu0
      %v246 = vmax.f32 %v243, 0.0
      %247 = vmatprep.subr.mxu0 0.0
      %248 = vmatpush1.msra.mxu0 %v156
      %249 = vmatprep.subr.mxu0 0.0
      %250 = vmatpush1.msra.mxu0 %v157
      %251 = vmatprep.subr.mxu0 0.0
      %252 = vmatpush1.msra.mxu0 %v158
      %253 = vmatprep.subr.mxu0 0.0
      %254 = vmatpush1.msra.mxu0 %v159
      %255 = vmatprep.subr.mxu0 0.0
      %256 = vmatpush1.msra.mxu0 %v160
      %257 = vmatprep.subr.mxu0 0.0
      %258 = vmatpush1.msra.mxu0 %v161
      %259 = vmatprep.subr.mxu0 0.0
      %260 = vmatpush1.msra.mxu0 %v162
      %261 = vmatprep.subr.mxu0 0.0
      %262 = vmatpush1.msra.mxu0 %v163
      %263 = vmatprep.subr.mxu0 0.0
      %264 = vmatpush1.msra.mxu0 %v164
      %265 = vmatprep.subr.mxu0 0.0
      %266 = vmatpush1.msra.mxu0 %v165
      %267 = vmatprep.subr.mxu0 0.0
      %268 = vmatpush1.msra.mxu0 %v166
      %269 = vmatprep.subr.mxu0 0.0
      %270 = vmatpush1.msra.mxu0 %v167
      %271 = vmatprep.subr.mxu0 0.0
      %272 = vmatpush1.msra.mxu0 %v168
      %273 = vmatprep.subr.mxu0 0.0
      %274 = vmatpush1.msra.mxu0 %v169
      %275 = vmatprep.subr.mxu0 0.0
      %276 = vmatpush1.msra.mxu0 %v170
      %277 = vmatprep.subr.mxu0 0.0
      %278 = vmatpush1.msra.mxu0 %v171
      %279 = vmatprep.subr.mxu0 0.0
      %280 = vmatpush1.msra.mxu0 0.0
      %281 = vmatprep.subr.mxu0 0.0
      %282 = vmatpush1.msra.mxu0 0.0
      %283 = vmatprep.subr.mxu0 0.0
      %284 = vmatpush1.msra.mxu0 0.0
      %285 = vmatprep.subr.mxu0 0.0
      %286 = vmatpush1.msra.mxu0 0.0
      %287 = vmatprep.subr.mxu0 0.0
      %288 = vmatpush1.msra.mxu0 0.0
      %289 = vmatprep.subr.mxu0 0.0
      %290 = vmatpush1.msra.mxu0 0.0
      %291 = vmatprep.subr.mxu0 0.0
      %292 = vmatpush1.msra.mxu0 0.0
      %293 = vmatprep.subr.mxu0 0.0
      %294 = vmatpush1.msra.mxu0 0.0
      %295 = vmatprep.subr.mxu0 0.0
      %296 = vmatpush1.msra.mxu0 0.0
      %297 = vmatprep.subr.mxu0 0.0
      %298 = vmatpush1.msra.mxu0 0.0
      %299 = vmatprep.subr.mxu0 0.0
      %300 = vmatpush1.msra.mxu0 0.0
      %301 = vmatprep.subr.mxu0 0.0
      %302 = vmatpush1.msra.mxu0 0.0
      %303 = vmatprep.subr.mxu0 0.0
      %304 = vmatpush1.msra.mxu0 0.0
      %305 = vmatprep.subr.mxu0 0.0
      %306 = vmatpush1.msra.mxu0 0.0
      %307 = vmatprep.subr.mxu0 0.0
      %308 = vmatpush1.msra.mxu0 0.0
      %309 = vmatprep.subr.mxu0 0.0
      %310 = vmatpush1.msra.mxu0 0.0
      %311 = vmatprep.mubr.f32.mxu0 0.0
      %312 = vmatmul.mubr.f32.gmra.mrb[0].mxu0 %v246
      %v313 = vpop.f32.mrb[0].mxu0
      %v314 = vadd.f32 0.0, %v313
      %v315 = vpop.f32.mrb[0].mxu0
      %316 = vdwg.mxu0
      %v318 = vrot.slane %v314, 2
      %v320 = vadd.f32 %v314, %v318
      %v321 = vxor.u32 %v320, 2147483648
      %v322 = vmul.f32 %v321, 1.442695
      %v323 = vpow.pop %v322
      %v324 = vadd.f32 %v323, 1.0
      %v325 = vrcp.pop %v324
      %v326 = vmul.f32 1.0, %v325
      %vm327 = vcmask 123904
      %328 = vst.msk [vmem:[#allocation4] sm:$0x3] %vm327, %v326
    $region21: #{tpu_custom_call.1} parent=1 // pred_fallthru
      _
    // Predicated region
    $region22: #{tpu_custom_call.1} parent=1 // pred_check
      _
    $region23: #{tpu_custom_call.1} parent=1 // pred_check_branch
      %330 = sbr.rel (0) target = $region25
    $region24: #{tpu_custom_call.1} parent=1 // pred_region
      %s332 = ssub.s32 32, 32
      %333 = vsyncadd [#allocation5], %s332
      %s335 = sshll.u32 [#allocation4], 4
      %s336 = int_to_ptr.vmem [resolvable:$true] %s335
      %338 = dma.vmem_to_hbm [thread:$0]  %s336, 32, %s3, [#allocation5]
    $region25: #{tpu_custom_call.1} parent=1 // pred_fallthru
      _
    // Predicated region
    $region26: #{tpu_custom_call.1} parent=1 // pred_check
      _
    $region27: #{tpu_custom_call.1} parent=1 // pred_check_branch
      %340 = sbr.rel (0) target = $region29
    $region28: #{tpu_custom_call.1} parent=1 // pred_region
      %341 = dma.done [#allocation5], 32
    $region29: #{tpu_custom_call.1} parent=1 // pred_fallthru
      _
    %342 = vsyncpa [#allocation5], 1

</llo_original>
